<compile_context>
chip_gen: v7x
topology: tpu7x:2x2x1
jax: 0.10.0
libtpu: 0.0.40
codegen_flags: <defaults>
</compile_context>

<pallas_src>
import functools

import jax
import jax.numpy as jnp
from jax import lax
from jax.experimental import pallas as pl
from jax.experimental.pallas import tpu as pltpu


# ----------------------------------------------------------------------------
# Fused Pallas kernel (NB images per grid step)
# ----------------------------------------------------------------------------
def _se_resnet_kernel(x_ref, consts_ref, w_ref, se_ref, o_ref,
                      zp_ref, pat_ref, *, width):
    """Whole SE-ResNet block, lane-dense (C_pad, H*W) layout.

    x_ref:      (NB, Cp, HW)          input images (channels zero-padded)
    consts_ref: (3, HW)               [mask col>=1 ; mask col<=W-2 ; fc1 bias]
    w_ref:      (Cp, 9*Cp)            BN-folded conv weights, tap-major
    se_ref:     (Cp, 2+2*Cr)          [bias | fc2 bias | fc1_w^T | fc2_w]
    o_ref:      (NB, Cp, HW)          output
    zp_ref:     (NB, Cp, HW+2*(W+1))  per-image zero-halo scratch
    pat_ref:    (9*Cp, NB*HW)         im2col patches scratch (MXU RHS)
    """
    n_img, c_pad, hw = o_ref.shape
    pad = (zp_ref.shape[2] - hw) // 2
    cr = (se_ref.shape[1] - 2) // 2

    mask_l = consts_ref[0:1, :]                 # (1, HW)  valid for dx = -1
    mask_r = consts_ref[1:2, :]                 # (1, HW)  valid for dx = +1
    f1b = consts_ref[2:3, 0:cr]                 # (1, Cr)
    w_mat = w_ref[...]                          # (Cp, 9*Cp)
    bias = se_ref[:, 0:1]                       # (Cp, 1)  folded conv+BN bias
    f2b = se_ref[:, 1:2]                        # (Cp, 1)
    f1wt = se_ref[:, 2:2 + cr]                  # (Cp, Cr)
    f2w = se_ref[:, 2 + cr:2 + 2 * cr]          # (Cp, Cr)

    # Zero only the halo lanes; the interior is fully overwritten each stage.
    # Unconditional (NOT gated on program_id): every core owns its scratch.
    halo = jnp.zeros((c_pad, pad), jnp.float32)
    for n in range(n_img):
        zp_ref[n, :, 0:pad] = halo
        zp_ref[n, :, pad + hw:pad + hw + pad] = halo

    def conv_stage(load_img):
        # 3x3 conv + folded BN for all images: taps go straight into the
        # aligned patches scratch, then ONE (Cp, 9Cp) @ (9Cp, NB*HW) matmul.
        for n in range(n_img):
            zp_ref[n, :, pad:pad + hw] = load_img(n)
        for n in range(n_img):
            tap = 0
            for dy in (-1, 0, 1):
                for dx in (-1, 0, 1):
                    start = pad + dy * width + dx
                    s = zp_ref[n, :, start:start + hw]          # (Cp, HW)
                    if dx == -1:
                        s = s * mask_l          # kill wrap at left image edge
                    elif dx == 1:
                        s = s * mask_r          # kill wrap at right image edge
                    pat_ref[tap * c_pad:(tap + 1) * c_pad,
                            n * hw:(n + 1) * hw] = s
                    tap += 1
        y = jnp.dot(w_mat, pat_ref[...],
                    preferred_element_type=jnp.float32)         # (Cp, NB*HW)
        return y + bias

    # Stage 1: conv -> BN -> (Dropout = id in eval) -> ReLU
    h1 = jnp.maximum(conv_stage(lambda n: x_ref[n]), 0.0)
    # Stage 2: conv -> BN -> (Dropout = id)   (no ReLU before SE)
    h2 = conv_stage(lambda n: h1[:, n * hw:(n + 1) * hw])

    inv_hw = 1.0 / hw
    for n in range(n_img):
        h2n = h2[:, n * hw:(n + 1) * hw]                        # (Cp, HW)
        # ---- Squeeze-and-Excitation (per-channel scalars) ------------------
        pooled = jnp.sum(h2n, axis=1, keepdims=True) * inv_hw   # (Cp, 1)
        s1 = jnp.sum(f1wt * pooled, axis=0, keepdims=True) + f1b
        s1 = jnp.maximum(s1, 0.0)                               # (1, Cr)
        s2 = jnp.sum(f2w * s1, axis=1, keepdims=True) + f2b     # (Cp, 1)
        gate = 1.0 / (1.0 + jnp.exp(-s2))                       # sigmoid
        # SE gate, residual add, final ReLU.
        out = jnp.maximum(h2n * gate + x_ref[n], 0.0)
        o_ref[n] = out.astype(o_ref.dtype)


# ----------------------------------------------------------------------------
# Wrapper
# ----------------------------------------------------------------------------
def _images_per_step(batch):
    """Fold the batch on single-TC chips; keep per-image grid on dual-TC."""
    try:
        kind = jax.devices()[0].device_kind.lower()
    except Exception:  # pragma: no cover - defensive
        return 1
    single_tc = any(tag in kind for tag in
                    ("v5 lite", "v5e", "v5litepod", "v6 lite", "v6e"))
    return batch if single_tc else 1


@functools.partial(jax.jit, static_argnames=("images_per_step", "eps"))
def _se_resnet_forward_impl(x_nchw, conv_w, conv_b, gamma, beta, run_mean,
                            run_var, fc1_w, fc1_b, fc2_w, fc2_b,
                            images_per_step=1, eps=1e-5):
    N, C, H, W = x_nchw.shape
    HW = H * W
    Cr = fc1_w.shape[0]
    C_pad = -(-C // 8) * 8                      # sublane-align channels
    assert W >= 2 and H >= 2, "halo/mask scheme assumes H, W >= 2"
    assert HW >= Cr, "fc1 bias is packed into the (3, HW) constants slab"
    NB = images_per_step
    if N % NB != 0:
        NB = 1

    f32 = jnp.float32
    # Fold BN (eval) into the conv weights (scale) and a per-channel bias.
    inv_std = lax.rsqrt(run_var.astype(f32) + eps)
    scale = gamma.astype(f32) * inv_std                                   # (C,)
    bias = (conv_b.astype(f32) - run_mean.astype(f32)) * scale + beta.astype(f32)

    # OIHW * scale -> (Co, ky, kx, Ci) -> (C_pad, 9*C_pad), tap-major, padded.
    w_scaled = conv_w.astype(f32) * scale[:, None, None, None]
    w_t = jnp.transpose(w_scaled, (0, 2, 3, 1)).reshape(C, 9, C)
    w_mat = jnp.zeros((C_pad, 9, C_pad), f32).at[:C, :, :C].set(w_t)
    w_mat = w_mat.reshape(C_pad, 9 * C_pad)

    # SE / bias parameters coalesced into one (C_pad, 2 + 2*Cr) slab.
    se_slab = jnp.zeros((C_pad, 2 + 2 * Cr), f32)
    se_slab = se_slab.at[:C, 0].set(bias)
    se_slab = se_slab.at[:C, 1].set(fc2_b.astype(f32).reshape(C))
    se_slab = se_slab.at[:C, 2:2 + Cr].set(
        jnp.transpose(fc1_w.astype(f32).reshape(Cr, C)))
    se_slab = se_slab.at[:C, 2 + Cr:2 + 2 * Cr].set(
        fc2_w.astype(f32).reshape(C, Cr))

    # Edge-validity masks + fc1 bias coalesced into one (3, HW) slab.
    col = jnp.arange(HW, dtype=jnp.int32) % W
    mask_l = (col >= 1).astype(f32)
    mask_r = (col <= W - 2).astype(f32)
    f1b_row = jnp.zeros((HW,), f32).at[:Cr].set(fc1_b.astype(f32).reshape(Cr))
    consts = jnp.stack([mask_l, mask_r, f1b_row], axis=0)                 # (3, HW)

    # Channel-padded, lane-dense activations (N, C_pad, HW).
    x_flat = x_nchw.reshape(N, C, HW).astype(f32)
    if C_pad != C:
        x_flat = jnp.pad(x_flat, ((0, 0), (0, C_pad - C), (0, 0)))

    hwp = HW + 2 * (W + 1)
    kernel = functools.partial(_se_resnet_kernel, width=W)
    out = pl.pallas_call(
        kernel,
        out_shape=jax.ShapeDtypeStruct((N, C_pad, HW), f32),
        grid_spec=pltpu.PrefetchScalarGridSpec(
            num_scalar_prefetch=0,
            grid=(N // NB,),
            in_specs=[
                pl.BlockSpec((NB, C_pad, HW), lambda g: (g, 0, 0)),
                pl.BlockSpec((3, HW), lambda g: (0, 0)),
                pl.BlockSpec((C_pad, 9 * C_pad), lambda g: (0, 0)),
                pl.BlockSpec((C_pad, 2 + 2 * Cr), lambda g: (0, 0)),
            ],
            out_specs=pl.BlockSpec((NB, C_pad, HW), lambda g: (g, 0, 0)),
            scratch_shapes=[
                pltpu.VMEM((NB, C_pad, hwp), f32),       # zero-halo image slabs
                pltpu.VMEM((9 * C_pad, NB * HW), f32),   # im2col patches (RHS)
            ],
        ),
        compiler_params=pltpu.CompilerParams(
            dimension_semantics=("parallel",)),
    )(x_flat, consts, w_mat, se_slab)

    out = out[:, :C, :].reshape(N, C, H, W)
    return out.astype(x_nchw.dtype)


def se_resnet_block_forward(x_nchw, conv_w, conv_b, gamma, beta, run_mean,
                            run_var, fc1_w, fc1_b, fc2_w, fc2_b, eps=1e-5):
    """SE_ResNetBlock forward (eval mode). Input/output in PyTorch NCHW."""
    nb = _images_per_step(int(x_nchw.shape[0]))
    return _se_resnet_forward_impl(x_nchw, conv_w, conv_b, gamma, beta,
                                   run_mean, run_var, fc1_w, fc1_b, fc2_w,
                                   fc2_b, images_per_step=nb, eps=eps)


# ----------------------------------------------------------------------------
# Pure-JAX reference (matches PyTorch eval-mode forward)
# ----------------------------------------------------------------------------
def _reference(x, w, b, gamma, beta, mean, var, f1w, f1b, f2w, f2b, eps=1e-5):
    def conv_bn(z):
        y = lax.conv_general_dilated(
            z, w, window_strides=(1, 1), padding=((1, 1), (1, 1)),
            dimension_numbers=("NCHW", "OIHW", "NCHW"))
        y = y + b[None, :, None, None]
        y = (y - mean[None, :, None, None]) * lax.rsqrt(
            var + eps)[None, :, None, None]
        return y * gamma[None, :, None, None] + beta[None, :, None, None]

    def conv1x1(z, wt, bi):
        y = lax.conv_general_dilated(
            z, wt, window_strides=(1, 1), padding=((0, 0), (0, 0)),
            dimension_numbers=("NCHW", "OIHW", "NCHW"))
        return y + bi[None, :, None, None]

    identity = x
    out = jnp.maximum(conv_bn(x), 0.0)
    out = conv_bn(out)
    se = jnp.mean(out, axis=(2, 3), keepdims=True)
    se = jnp.maximum(conv1x1(se, f1w, f1b), 0.0)
    se = jax.nn.sigmoid(conv1x1(se, f2w, f2b))
    out = out * se + identity
    return jnp.maximum(out, 0.0)


# ----------------------------------------------------------------------------
if __name__ == "__main__":
    key = jax.random.PRNGKey(0)
    keys = jax.random.split(key, 11)

    N, C, H, W = 2, 4, 16, 16      # batch=2, n_features=4, spatial=16
    r = 2                          # SE reduction -> C//r = 2
    Cr = C // r
    droprate = 0.1                 # Dropout -> identity in eval mode

    x = jax.random.normal(keys[0], (N, C, H, W), jnp.float32)
    conv_w = jax.random.normal(keys[1], (C, C, 3, 3), jnp.float32) * 0.1
    conv_b = jax.random.normal(keys[2], (C,), jnp.float32) * 0.1
    gamma = 1.0 + 0.1 * jax.random.normal(keys[3], (C,), jnp.float32)
    beta = 0.1 * jax.random.normal(keys[4], (C,), jnp.float32)
    run_mean = 0.1 * jax.random.normal(keys[5], (C,), jnp.float32)
    run_var = jnp.abs(jax.random.normal(keys[6], (C,), jnp.float32)) + 0.5
    fc1_w = jax.random.normal(keys[7], (Cr, C, 1, 1), jnp.float32) * 0.3
    fc1_b = 0.1 * jax.random.normal(keys[8], (Cr,), jnp.float32)
    fc2_w = jax.random.normal(keys[9], (C, Cr, 1, 1), jnp.float32) * 0.3
    fc2_b = 0.1 * jax.random.normal(keys[10], (C,), jnp.float32)

    out = se_resnet_block_forward(x, conv_w, conv_b, gamma, beta, run_mean,
                                  run_var, fc1_w, fc1_b, fc2_w, fc2_b)
    out = jax.block_until_ready(out)

    ref = _reference(x, conv_w, conv_b, gamma, beta, run_mean, run_var,
                     fc1_w, fc1_b, fc2_w, fc2_b)
    assert out.shape == (N, C, H, W)
    max_err = float(jnp.max(jnp.abs(out - ref)))
    assert jnp.allclose(out, ref, atol=1e-4, rtol=1e-4), max_err

    print("KERNEL_OK")
</pallas_src>

<mosaic_0001>
module attributes {stable_mosaic.version = 11 : i64} {
  func.func @_se_resnet_kernel(%arg0: i32, %arg1: memref<1x8x256xf32, #tpu.memory_space<vmem>>, %arg2: memref<3x256xf32, #tpu.memory_space<vmem>>, %arg3: memref<8x72xf32, #tpu.memory_space<vmem>>, %arg4: memref<8x6xf32, #tpu.memory_space<vmem>>, %arg5: memref<1x8x256xf32, #tpu.memory_space<vmem>>, %arg6: memref<1x8x290xf32, #tpu.memory_space<vmem>>, %arg7: memref<72x256xf32, #tpu.memory_space<vmem>>) attributes {dimension_semantics = [#tpu.dimension_semantics<parallel>], iteration_bounds = array<i64: 2>, scalar_prefetch = 0 : i64, scratch_operands = 2 : i64, tpu.core_type = #tpu.core_type<tc>, window_params = [{transform_indices = @transform_0, window_bounds = array<i64: 1, 8, 256>}, {pipeline_mode = #tpu.pipeline_mode<synchronous>, transform_indices = @transform_1, window_bounds = array<i64: 3, 256>}, {pipeline_mode = #tpu.pipeline_mode<synchronous>, transform_indices = @transform_2, window_bounds = array<i64: 8, 72>}, {pipeline_mode = #tpu.pipeline_mode<synchronous>, transform_indices = @transform_3, window_bounds = array<i64: 8, 6>}, {transform_indices = @transform_4, window_bounds = array<i64: 1, 8, 256>}]} {
    %c0 = arith.constant 0 : index
    %c0_0 = arith.constant 0 : index
    %0 = vector.load %arg2[%c0, %c0_0] : memref<3x256xf32, #tpu.memory_space<vmem>>, vector<1x256xf32>
    %c1 = arith.constant 1 : index
    %c0_1 = arith.constant 0 : index
    %1 = vector.load %arg2[%c1, %c0_1] : memref<3x256xf32, #tpu.memory_space<vmem>>, vector<1x256xf32>
    %c2 = arith.constant 2 : index
    %c0_2 = arith.constant 0 : index
    %2 = vector.load %arg2[%c2, %c0_2] : memref<3x256xf32, #tpu.memory_space<vmem>>, vector<1x2xf32>
    %c0_3 = arith.constant 0 : index
    %c0_4 = arith.constant 0 : index
    %3 = vector.load %arg3[%c0_3, %c0_4] : memref<8x72xf32, #tpu.memory_space<vmem>>, vector<8x72xf32>
    %c0_5 = arith.constant 0 : index
    %c0_6 = arith.constant 0 : index
    %4 = vector.load %arg4[%c0_5, %c0_6] : memref<8x6xf32, #tpu.memory_space<vmem>>, vector<8x1xf32>
    %c0_7 = arith.constant 0 : index
    %c1_8 = arith.constant 1 : index
    %5 = vector.load %arg4[%c0_7, %c1_8] : memref<8x6xf32, #tpu.memory_space<vmem>>, vector<8x1xf32>
    %c0_9 = arith.constant 0 : index
    %c2_10 = arith.constant 2 : index
    %6 = vector.load %arg4[%c0_9, %c2_10] : memref<8x6xf32, #tpu.memory_space<vmem>>, vector<8x2xf32>
    %c0_11 = arith.constant 0 : index
    %c4 = arith.constant 4 : index
    %7 = vector.load %arg4[%c0_11, %c4] : memref<8x6xf32, #tpu.memory_space<vmem>>, vector<8x2xf32>
    %cst = arith.constant 0.000000e+00 : f32
    %8 = vector.broadcast %cst : f32 to vector<8x17xf32>
    %c0_12 = arith.constant 0 : index
    %c0_13 = arith.constant 0 : index
    %c0_14 = arith.constant 0 : index
    %9 = vector.load %arg6[%c0_12, %c0_13, %c0_14] : memref<1x8x290xf32, #tpu.memory_space<vmem>>, vector<1x8x17xf32>
    %10 = vector.shape_cast %9 : vector<1x8x17xf32> to vector<8x17xf32>
    %11 = vector.shape_cast %8 : vector<8x17xf32> to vector<1x8x17xf32>
    tpu.vector_store %arg6[%c0_12, %c0_13, %c0_14], %11 {strides = array<i32>} : memref<1x8x290xf32, #tpu.memory_space<vmem>>, vector<1x8x17xf32>,
    %c0_15 = arith.constant 0 : index
    %c0_16 = arith.constant 0 : index
    %c273 = arith.constant 273 : index
    %12 = vector.load %arg6[%c0_15, %c0_16, %c273] : memref<1x8x290xf32, #tpu.memory_space<vmem>>, vector<1x8x17xf32>
    %13 = vector.shape_cast %12 : vector<1x8x17xf32> to vector<8x17xf32>
    %14 = vector.shape_cast %8 : vector<8x17xf32> to vector<1x8x17xf32>
    tpu.vector_store %arg6[%c0_15, %c0_16, %c273], %14 {strides = array<i32>} : memref<1x8x290xf32, #tpu.memory_space<vmem>>, vector<1x8x17xf32>,
    %c0_17 = arith.constant 0 : index
    %c0_18 = arith.constant 0 : index
    %c0_19 = arith.constant 0 : index
    %15 = vector.load %arg1[%c0_17, %c0_18, %c0_19] : memref<1x8x256xf32, #tpu.memory_space<vmem>>, vector<1x8x256xf32>
    %16 = vector.shape_cast %15 : vector<1x8x256xf32> to vector<8x256xf32>
    %c0_20 = arith.constant 0 : index
    %c0_21 = arith.constant 0 : index
    %c17 = arith.constant 17 : index
    %17 = vector.load %arg6[%c0_20, %c0_21, %c17] : memref<1x8x290xf32, #tpu.memory_space<vmem>>, vector<1x8x256xf32>
    %18 = vector.shape_cast %17 : vector<1x8x256xf32> to vector<8x256xf32>
    %19 = vector.shape_cast %16 : vector<8x256xf32> to vector<1x8x256xf32>
    tpu.vector_store %arg6[%c0_20, %c0_21, %c17], %19 {strides = array<i32>} : memref<1x8x290xf32, #tpu.memory_space<vmem>>, vector<1x8x256xf32>,
    %c0_22 = arith.constant 0 : index
    %c0_23 = arith.constant 0 : index
    %c0_24 = arith.constant 0 : index
    %20 = vector.load %arg6[%c0_22, %c0_23, %c0_24] : memref<1x8x290xf32, #tpu.memory_space<vmem>>, vector<1x8x256xf32>
    %21 = vector.shape_cast %20 : vector<1x8x256xf32> to vector<8x256xf32>
    %22 = vector.broadcast %0 : vector<1x256xf32> to vector<8x256xf32>
    %23 = arith.mulf %21, %22 : vector<8x256xf32>
    %c0_25 = arith.constant 0 : index
    %c0_26 = arith.constant 0 : index
    %24 = vector.load %arg7[%c0_25, %c0_26] : memref<72x256xf32, #tpu.memory_space<vmem>>, vector<8x256xf32>
    tpu.vector_store %arg7[%c0_25, %c0_26], %23 {strides = array<i32>} : memref<72x256xf32, #tpu.memory_space<vmem>>, vector<8x256xf32>,
    %c0_27 = arith.constant 0 : index
    %c0_28 = arith.constant 0 : index
    %c1_29 = arith.constant 1 : index
    %25 = vector.load %arg6[%c0_27, %c0_28, %c1_29] : memref<1x8x290xf32, #tpu.memory_space<vmem>>, vector<1x8x256xf32>
    %26 = vector.shape_cast %25 : vector<1x8x256xf32> to vector<8x256xf32>
    %c8 = arith.constant 8 : index
    %c0_30 = arith.constant 0 : index
    %27 = vector.load %arg7[%c8, %c0_30] : memref<72x256xf32, #tpu.memory_space<vmem>>, vector<8x256xf32>
    tpu.vector_store %arg7[%c8, %c0_30], %26 {strides = array<i32>} : memref<72x256xf32, #tpu.memory_space<vmem>>, vector<8x256xf32>,
    %c0_31 = arith.constant 0 : index
    %c0_32 = arith.constant 0 : index
    %c2_33 = arith.constant 2 : index
    %28 = vector.load %arg6[%c0_31, %c0_32, %c2_33] : memref<1x8x290xf32, #tpu.memory_space<vmem>>, vector<1x8x256xf32>
    %29 = vector.shape_cast %28 : vector<1x8x256xf32> to vector<8x256xf32>
    %30 = vector.broadcast %1 : vector<1x256xf32> to vector<8x256xf32>
    %31 = arith.mulf %29, %30 : vector<8x256xf32>
    %c16 = arith.constant 16 : index
    %c0_34 = arith.constant 0 : index
    %32 = vector.load %arg7[%c16, %c0_34] : memref<72x256xf32, #tpu.memory_space<vmem>>, vector<8x256xf32>
    tpu.vector_store %arg7[%c16, %c0_34], %31 {strides = array<i32>} : memref<72x256xf32, #tpu.memory_space<vmem>>, vector<8x256xf32>,
    %c0_35 = arith.constant 0 : index
    %c0_36 = arith.constant 0 : index
    %c16_37 = arith.constant 16 : index
    %33 = vector.load %arg6[%c0_35, %c0_36, %c16_37] : memref<1x8x290xf32, #tpu.memory_space<vmem>>, vector<1x8x256xf32>
    %34 = vector.shape_cast %33 : vector<1x8x256xf32> to vector<8x256xf32>
    %35 = vector.broadcast %0 : vector<1x256xf32> to vector<8x256xf32>
    %36 = arith.mulf %34, %35 : vector<8x256xf32>
    %c24 = arith.constant 24 : index
    %c0_38 = arith.constant 0 : index
    %37 = vector.load %arg7[%c24, %c0_38] : memref<72x256xf32, #tpu.memory_space<vmem>>, vector<8x256xf32>
    tpu.vector_store %arg7[%c24, %c0_38], %36 {strides = array<i32>} : memref<72x256xf32, #tpu.memory_space<vmem>>, vector<8x256xf32>,
    %c0_39 = arith.constant 0 : index
    %c0_40 = arith.constant 0 : index
    %c17_41 = arith.constant 17 : index
    %38 = vector.load %arg6[%c0_39, %c0_40, %c17_41] : memref<1x8x290xf32, #tpu.memory_space<vmem>>, vector<1x8x256xf32>
    %39 = vector.shape_cast %38 : vector<1x8x256xf32> to vector<8x256xf32>
    %c32 = arith.constant 32 : index
    %c0_42 = arith.constant 0 : index
    %40 = vector.load %arg7[%c32, %c0_42] : memref<72x256xf32, #tpu.memory_space<vmem>>, vector<8x256xf32>
    tpu.vector_store %arg7[%c32, %c0_42], %39 {strides = array<i32>} : memref<72x256xf32, #tpu.memory_space<vmem>>, vector<8x256xf32>,
    %c0_43 = arith.constant 0 : index
    %c0_44 = arith.constant 0 : index
    %c18 = arith.constant 18 : index
    %41 = vector.load %arg6[%c0_43, %c0_44, %c18] : memref<1x8x290xf32, #tpu.memory_space<vmem>>, vector<1x8x256xf32>
    %42 = vector.shape_cast %41 : vector<1x8x256xf32> to vector<8x256xf32>
    %43 = vector.broadcast %1 : vector<1x256xf32> to vector<8x256xf32>
    %44 = arith.mulf %42, %43 : vector<8x256xf32>
    %c40 = arith.constant 40 : index
    %c0_45 = arith.constant 0 : index
    %45 = vector.load %arg7[%c40, %c0_45] : memref<72x256xf32, #tpu.memory_space<vmem>>, vector<8x256xf32>
    tpu.vector_store %arg7[%c40, %c0_45], %44 {strides = array<i32>} : memref<72x256xf32, #tpu.memory_space<vmem>>, vector<8x256xf32>,
    %c0_46 = arith.constant 0 : index
    %c0_47 = arith.constant 0 : index
    %c32_48 = arith.constant 32 : index
    %46 = vector.load %arg6[%c0_46, %c0_47, %c32_48] : memref<1x8x290xf32, #tpu.memory_space<vmem>>, vector<1x8x256xf32>
    %47 = vector.shape_cast %46 : vector<1x8x256xf32> to vector<8x256xf32>
    %48 = vector.broadcast %0 : vector<1x256xf32> to vector<8x256xf32>
    %49 = arith.mulf %47, %48 : vector<8x256xf32>
    %c48 = arith.constant 48 : index
    %c0_49 = arith.constant 0 : index
    %50 = vector.load %arg7[%c48, %c0_49] : memref<72x256xf32, #tpu.memory_space<vmem>>, vector<8x256xf32>
    tpu.vector_store %arg7[%c48, %c0_49], %49 {strides = array<i32>} : memref<72x256xf32, #tpu.memory_space<vmem>>, vector<8x256xf32>,
    %c0_50 = arith.constant 0 : index
    %c0_51 = arith.constant 0 : index
    %c33 = arith.constant 33 : index
    %51 = vector.load %arg6[%c0_50, %c0_51, %c33] : memref<1x8x290xf32, #tpu.memory_space<vmem>>, vector<1x8x256xf32>
    %52 = vector.shape_cast %51 : vector<1x8x256xf32> to vector<8x256xf32>
    %c56 = arith.constant 56 : index
    %c0_52 = arith.constant 0 : index
    %53 = vector.load %arg7[%c56, %c0_52] : memref<72x256xf32, #tpu.memory_space<vmem>>, vector<8x256xf32>
    tpu.vector_store %arg7[%c56, %c0_52], %52 {strides = array<i32>} : memref<72x256xf32, #tpu.memory_space<vmem>>, vector<8x256xf32>,
    %c0_53 = arith.constant 0 : index
    %c0_54 = arith.constant 0 : index
    %c34 = arith.constant 34 : index
    %54 = vector.load %arg6[%c0_53, %c0_54, %c34] : memref<1x8x290xf32, #tpu.memory_space<vmem>>, vector<1x8x256xf32>
    %55 = vector.shape_cast %54 : vector<1x8x256xf32> to vector<8x256xf32>
    %56 = vector.broadcast %1 : vector<1x256xf32> to vector<8x256xf32>
    %57 = arith.mulf %55, %56 : vector<8x256xf32>
    %c64 = arith.constant 64 : index
    %c0_55 = arith.constant 0 : index
    %58 = vector.load %arg7[%c64, %c0_55] : memref<72x256xf32, #tpu.memory_space<vmem>>, vector<8x256xf32>
    tpu.vector_store %arg7[%c64, %c0_55], %57 {strides = array<i32>} : memref<72x256xf32, #tpu.memory_space<vmem>>, vector<8x256xf32>,
    %c0_56 = arith.constant 0 : index
    %c0_57 = arith.constant 0 : index
    %59 = vector.load %arg7[%c0_56, %c0_57] : memref<72x256xf32, #tpu.memory_space<vmem>>, vector<72x256xf32>
    %cst_58 = arith.constant dense<0.000000e+00> : vector<8x256xf32>
    %60 = tpu.matmul %3, %59, %cst_58 {dimension_numbers = #tpu.dot_dimension_numbers<[1], [0], [0], [1], [0, 0, 1, 1], [], []>} : vector<8x72xf32>, vector<72x256xf32>, vector<8x256xf32> -> vector<8x256xf32>
    %61 = vector.broadcast %4 : vector<8x1xf32> to vector<8x256xf32>
    %62 = arith.addf %60, %61 : vector<8x256xf32>
    %cst_59 = arith.constant 0.000000e+00 : f32
    %63 = vector.broadcast %cst_59 : f32 to vector<8x256xf32>
    %64 = arith.maximumf %62, %63 : vector<8x256xf32>
    %c0_60 = arith.constant 0 : index
    %c0_61 = arith.constant 0 : index
    %c17_62 = arith.constant 17 : index
    %65 = vector.load %arg6[%c0_60, %c0_61, %c17_62] : memref<1x8x290xf32, #tpu.memory_space<vmem>>, vector<1x8x256xf32>
    %66 = vector.shape_cast %65 : vector<1x8x256xf32> to vector<8x256xf32>
    %67 = vector.shape_cast %64 : vector<8x256xf32> to vector<1x8x256xf32>
    tpu.vector_store %arg6[%c0_60, %c0_61, %c17_62], %67 {strides = array<i32>} : memref<1x8x290xf32, #tpu.memory_space<vmem>>, vector<1x8x256xf32>,
    %c0_63 = arith.constant 0 : index
    %c0_64 = arith.constant 0 : index
    %c0_65 = arith.constant 0 : index
    %68 = vector.load %arg6[%c0_63, %c0_64, %c0_65] : memref<1x8x290xf32, #tpu.memory_space<vmem>>, vector<1x8x256xf32>
    %69 = vector.shape_cast %68 : vector<1x8x256xf32> to vector<8x256xf32>
    %70 = vector.broadcast %0 : vector<1x256xf32> to vector<8x256xf32>
    %71 = arith.mulf %69, %70 : vector<8x256xf32>
    %c0_66 = arith.constant 0 : index
    %c0_67 = arith.constant 0 : index
    %72 = vector.load %arg7[%c0_66, %c0_67] : memref<72x256xf32, #tpu.memory_space<vmem>>, vector<8x256xf32>
    tpu.vector_store %arg7[%c0_66, %c0_67], %71 {strides = array<i32>} : memref<72x256xf32, #tpu.memory_space<vmem>>, vector<8x256xf32>,
    %c0_68 = arith.constant 0 : index
    %c0_69 = arith.constant 0 : index
    %c1_70 = arith.constant 1 : index
    %73 = vector.load %arg6[%c0_68, %c0_69, %c1_70] : memref<1x8x290xf32, #tpu.memory_space<vmem>>, vector<1x8x256xf32>
    %74 = vector.shape_cast %73 : vector<1x8x256xf32> to vector<8x256xf32>
    %c8_71 = arith.constant 8 : index
    %c0_72 = arith.constant 0 : index
    %75 = vector.load %arg7[%c8_71, %c0_72] : memref<72x256xf32, #tpu.memory_space<vmem>>, vector<8x256xf32>
    tpu.vector_store %arg7[%c8_71, %c0_72], %74 {strides = array<i32>} : memref<72x256xf32, #tpu.memory_space<vmem>>, vector<8x256xf32>,
    %c0_73 = arith.constant 0 : index
    %c0_74 = arith.constant 0 : index
    %c2_75 = arith.constant 2 : index
    %76 = vector.load %arg6[%c0_73, %c0_74, %c2_75] : memref<1x8x290xf32, #tpu.memory_space<vmem>>, vector<1x8x256xf32>
    %77 = vector.shape_cast %76 : vector<1x8x256xf32> to vector<8x256xf32>
    %78 = vector.broadcast %1 : vector<1x256xf32> to vector<8x256xf32>
    %79 = arith.mulf %77, %78 : vector<8x256xf32>
    %c16_76 = arith.constant 16 : index
    %c0_77 = arith.constant 0 : index
    %80 = vector.load %arg7[%c16_76, %c0_77] : memref<72x256xf32, #tpu.memory_space<vmem>>, vector<8x256xf32>
    tpu.vector_store %arg7[%c16_76, %c0_77], %79 {strides = array<i32>} : memref<72x256xf32, #tpu.memory_space<vmem>>, vector<8x256xf32>,
    %c0_78 = arith.constant 0 : index
    %c0_79 = arith.constant 0 : index
    %c16_80 = arith.constant 16 : index
    %81 = vector.load %arg6[%c0_78, %c0_79, %c16_80] : memref<1x8x290xf32, #tpu.memory_space<vmem>>, vector<1x8x256xf32>
    %82 = vector.shape_cast %81 : vector<1x8x256xf32> to vector<8x256xf32>
    %83 = vector.broadcast %0 : vector<1x256xf32> to vector<8x256xf32>
    %84 = arith.mulf %82, %83 : vector<8x256xf32>
    %c24_81 = arith.constant 24 : index
    %c0_82 = arith.constant 0 : index
    %85 = vector.load %arg7[%c24_81, %c0_82] : memref<72x256xf32, #tpu.memory_space<vmem>>, vector<8x256xf32>
    tpu.vector_store %arg7[%c24_81, %c0_82], %84 {strides = array<i32>} : memref<72x256xf32, #tpu.memory_space<vmem>>, vector<8x256xf32>,
    %c0_83 = arith.constant 0 : index
    %c0_84 = arith.constant 0 : index
    %c17_85 = arith.constant 17 : index
    %86 = vector.load %arg6[%c0_83, %c0_84, %c17_85] : memref<1x8x290xf32, #tpu.memory_space<vmem>>, vector<1x8x256xf32>
    %87 = vector.shape_cast %86 : vector<1x8x256xf32> to vector<8x256xf32>
    %c32_86 = arith.constant 32 : index
    %c0_87 = arith.constant 0 : index
    %88 = vector.load %arg7[%c32_86, %c0_87] : memref<72x256xf32, #tpu.memory_space<vmem>>, vector<8x256xf32>
    tpu.vector_store %arg7[%c32_86, %c0_87], %87 {strides = array<i32>} : memref<72x256xf32, #tpu.memory_space<vmem>>, vector<8x256xf32>,
    %c0_88 = arith.constant 0 : index
    %c0_89 = arith.constant 0 : index
    %c18_90 = arith.constant 18 : index
    %89 = vector.load %arg6[%c0_88, %c0_89, %c18_90] : memref<1x8x290xf32, #tpu.memory_space<vmem>>, vector<1x8x256xf32>
    %90 = vector.shape_cast %89 : vector<1x8x256xf32> to vector<8x256xf32>
    %91 = vector.broadcast %1 : vector<1x256xf32> to vector<8x256xf32>
    %92 = arith.mulf %90, %91 : vector<8x256xf32>
    %c40_91 = arith.constant 40 : index
    %c0_92 = arith.constant 0 : index
    %93 = vector.load %arg7[%c40_91, %c0_92] : memref<72x256xf32, #tpu.memory_space<vmem>>, vector<8x256xf32>
    tpu.vector_store %arg7[%c40_91, %c0_92], %92 {strides = array<i32>} : memref<72x256xf32, #tpu.memory_space<vmem>>, vector<8x256xf32>,
    %c0_93 = arith.constant 0 : index
    %c0_94 = arith.constant 0 : index
    %c32_95 = arith.constant 32 : index
    %94 = vector.load %arg6[%c0_93, %c0_94, %c32_95] : memref<1x8x290xf32, #tpu.memory_space<vmem>>, vector<1x8x256xf32>
    %95 = vector.shape_cast %94 : vector<1x8x256xf32> to vector<8x256xf32>
    %96 = vector.broadcast %0 : vector<1x256xf32> to vector<8x256xf32>
    %97 = arith.mulf %95, %96 : vector<8x256xf32>
    %c48_96 = arith.constant 48 : index
    %c0_97 = arith.constant 0 : index
    %98 = vector.load %arg7[%c48_96, %c0_97] : memref<72x256xf32, #tpu.memory_space<vmem>>, vector<8x256xf32>
    tpu.vector_store %arg7[%c48_96, %c0_97], %97 {strides = array<i32>} : memref<72x256xf32, #tpu.memory_space<vmem>>, vector<8x256xf32>,
    %c0_98 = arith.constant 0 : index
    %c0_99 = arith.constant 0 : index
    %c33_100 = arith.constant 33 : index
    %99 = vector.load %arg6[%c0_98, %c0_99, %c33_100] : memref<1x8x290xf32, #tpu.memory_space<vmem>>, vector<1x8x256xf32>
    %100 = vector.shape_cast %99 : vector<1x8x256xf32> to vector<8x256xf32>
    %c56_101 = arith.constant 56 : index
    %c0_102 = arith.constant 0 : index
    %101 = vector.load %arg7[%c56_101, %c0_102] : memref<72x256xf32, #tpu.memory_space<vmem>>, vector<8x256xf32>
    tpu.vector_store %arg7[%c56_101, %c0_102], %100 {strides = array<i32>} : memref<72x256xf32, #tpu.memory_space<vmem>>, vector<8x256xf32>,
    %c0_103 = arith.constant 0 : index
    %c0_104 = arith.constant 0 : index
    %c34_105 = arith.constant 34 : index
    %102 = vector.load %arg6[%c0_103, %c0_104, %c34_105] : memref<1x8x290xf32, #tpu.memory_space<vmem>>, vector<1x8x256xf32>
    %103 = vector.shape_cast %102 : vector<1x8x256xf32> to vector<8x256xf32>
    %104 = vector.broadcast %1 : vector<1x256xf32> to vector<8x256xf32>
    %105 = arith.mulf %103, %104 : vector<8x256xf32>
    %c64_106 = arith.constant 64 : index
    %c0_107 = arith.constant 0 : index
    %106 = vector.load %arg7[%c64_106, %c0_107] : memref<72x256xf32, #tpu.memory_space<vmem>>, vector<8x256xf32>
    tpu.vector_store %arg7[%c64_106, %c0_107], %105 {strides = array<i32>} : memref<72x256xf32, #tpu.memory_space<vmem>>, vector<8x256xf32>,
    %c0_108 = arith.constant 0 : index
    %c0_109 = arith.constant 0 : index
    %107 = vector.load %arg7[%c0_108, %c0_109] : memref<72x256xf32, #tpu.memory_space<vmem>>, vector<72x256xf32>
    %cst_110 = arith.constant dense<0.000000e+00> : vector<8x256xf32>
    %108 = tpu.matmul %3, %107, %cst_110 {dimension_numbers = #tpu.dot_dimension_numbers<[1], [0], [0], [1], [0, 0, 1, 1], [], []>} : vector<8x72xf32>, vector<72x256xf32>, vector<8x256xf32> -> vector<8x256xf32>
    %109 = vector.broadcast %4 : vector<8x1xf32> to vector<8x256xf32>
    %110 = arith.addf %108, %109 : vector<8x256xf32>
    %cst_111 = arith.constant dense<0.000000e+00> : vector<8xf32>
    %111 = vector.multi_reduction <add>, %110, %cst_111 [1] : vector<8x256xf32> to vector<8xf32>
    %112 = vector.shape_cast %111 : vector<8xf32> to vector<8x1xf32>
    %cst_112 = arith.constant 3.906250e-03 : f32
    %113 = vector.broadcast %cst_112 : f32 to vector<8x1xf32>
    %114 = arith.mulf %112, %113 : vector<8x1xf32>
    %115 = vector.broadcast %114 : vector<8x1xf32> to vector<8x2xf32>
    %116 = arith.mulf %6, %115 : vector<8x2xf32>
    %cst_113 = arith.constant dense<0.000000e+00> : vector<2xf32>
    %117 = vector.multi_reduction <add>, %116, %cst_113 [0] : vector<8x2xf32> to vector<2xf32>
    %118 = vector.shape_cast %117 : vector<2xf32> to vector<1x2xf32>
    %119 = arith.addf %118, %2 : vector<1x2xf32>
    %cst_114 = arith.constant 0.000000e+00 : f32
    %120 = vector.broadcast %cst_114 : f32 to vector<1x2xf32>
    %121 = arith.maximumf %119, %120 : vector<1x2xf32>
    %122 = vector.broadcast %121 : vector<1x2xf32> to vector<8x2xf32>
    %123 = arith.mulf %7, %122 : vector<8x2xf32>
    %cst_115 = arith.constant dense<0.000000e+00> : vector<8xf32>
    %124 = vector.multi_reduction <add>, %123, %cst_115 [1] : vector<8x2xf32> to vector<8xf32>
    %125 = vector.shape_cast %124 : vector<8xf32> to vector<8x1xf32>
    %126 = arith.addf %125, %5 : vector<8x1xf32>
    %cst_116 = arith.constant 0.000000e+00 : f32
    %127 = vector.broadcast %cst_116 : f32 to vector<8x1xf32>
    %128 = arith.subf %127, %126 : vector<8x1xf32>
    %129 = math.exp %128 : vector<8x1xf32>
    %cst_117 = arith.constant 1.000000e+00 : f32
    %130 = vector.broadcast %cst_117 : f32 to vector<8x1xf32>
    %131 = arith.addf %130, %129 : vector<8x1xf32>
    %cst_118 = arith.constant 1.000000e+00 : f32
    %132 = vector.broadcast %cst_118 : f32 to vector<8x1xf32>
    %133 = arith.divf %132, %131 : vector<8x1xf32>
    %134 = vector.broadcast %133 : vector<8x1xf32> to vector<8x256xf32>
    %135 = arith.mulf %110, %134 : vector<8x256xf32>
    %c0_119 = arith.constant 0 : index
    %c0_120 = arith.constant 0 : index
    %c0_121 = arith.constant 0 : index
    %136 = vector.load %arg1[%c0_119, %c0_120, %c0_121] : memref<1x8x256xf32, #tpu.memory_space<vmem>>, vector<1x8x256xf32>
    %137 = vector.shape_cast %136 : vector<1x8x256xf32> to vector<8x256xf32>
    %138 = arith.addf %135, %137 : vector<8x256xf32>
    %cst_122 = arith.constant 0.000000e+00 : f32
    %139 = vector.broadcast %cst_122 : f32 to vector<8x256xf32>
    %140 = arith.maximumf %138, %139 : vector<8x256xf32>
    %c0_123 = arith.constant 0 : index
    %c0_124 = arith.constant 0 : index
    %c0_125 = arith.constant 0 : index
    %141 = vector.load %arg5[%c0_123, %c0_124, %c0_125] : memref<1x8x256xf32, #tpu.memory_space<vmem>>, vector<1x8x256xf32>
    %142 = vector.shape_cast %141 : vector<1x8x256xf32> to vector<8x256xf32>
    %143 = vector.shape_cast %140 : vector<8x256xf32> to vector<1x8x256xf32>
    tpu.vector_store %arg5[%c0_123, %c0_124, %c0_125], %143 {strides = array<i32>} : memref<1x8x256xf32, #tpu.memory_space<vmem>>, vector<1x8x256xf32>,
    return
  }
  func.func @transform_0(%arg0: i32) -> (i32, i32, i32) {
    %c0_i32 = arith.constant 0 : i32
    %c0_i32_0 = arith.constant 0 : i32
    %c0_i32_1 = arith.constant 0 : i32
    return %arg0, %c0_i32, %c0_i32_0 : i32, i32, i32
  }
  func.func @transform_1(%arg0: i32) -> (i32, i32) {
    %c0_i32 = arith.constant 0 : i32
    %c0_i32_0 = arith.constant 0 : i32
    %c0_i32_1 = arith.constant 0 : i32
    return %c0_i32, %c0_i32_0 : i32, i32
  }
  func.func @transform_2(%arg0: i32) -> (i32, i32) {
    %c0_i32 = arith.constant 0 : i32
    %c0_i32_0 = arith.constant 0 : i32
    %c0_i32_1 = arith.constant 0 : i32
    return %c0_i32, %c0_i32_0 : i32, i32
  }
  func.func @transform_3(%arg0: i32) -> (i32, i32) {
    %c0_i32 = arith.constant 0 : i32
    %c0_i32_0 = arith.constant 0 : i32
    %c0_i32_1 = arith.constant 0 : i32
    return %c0_i32, %c0_i32_0 : i32, i32
  }
  func.func @transform_4(%arg0: i32) -> (i32, i32, i32) {
    %c0_i32 = arith.constant 0 : i32
    %c0_i32_0 = arith.constant 0 : i32
    %c0_i32_1 = arith.constant 0 : i32
    return %arg0, %c0_i32, %c0_i32_0 : i32, i32, i32
  }
}

</mosaic_0001>

<llo_original>
// kernel: _se_resnet_forward_impl.1
$region0: #{_se_resnet_forward_impl.1}
  #allocation0 [shape = 'u32[]', space=smem, size = 0x4, offset = 0x4, fixed_abs, tag = 'smem constant byte address 0x4 - core index']
  #allocation1 [shape = 'u32[144,128]{1,0:T(1,128)}', space=vmem, size = 0x12000, scoped, tag = 'internal scratch']
  #allocation2 [shape = 'f32[1,8,290]{2,1,0:T(8,128)}', space=vmem, size = 0x3000, scoped, tag = 'scratch operand']
  #allocation3 [shape = 'f32[72,256]{1,0:T(8,128)}', space=vmem, size = 0x12000, scoped, tag = 'scratch operand']
  %s0 = inlined_call_operand.vmem [shape: f32[2,8,256], index: 0, kind: input, shape index: {}]
  %s1 = inlined_call_operand.vmem [shape: f32[3,256], index: 1, kind: input, shape index: {}]
  %s2 = inlined_call_operand.vmem [shape: f32[8,72], index: 2, kind: input, shape index: {}]
  %s3 = inlined_call_operand.vmem [shape: f32[8,6], index: 3, kind: input, shape index: {}]
  %s4 = inlined_call_operand.vmem [shape: f32[2,8,256], index: 4, kind: output, shape index: {}]
  %s5 = sld [smem:[#allocation0]]
  $region49: #{_se_resnet_forward_impl.1} parent=0
    _
  %s7 = ssub.s32 1, %s5
  %s8 = scalar_select 0, %s7, %s5
  loop: start=0, step=1, limit=4
  $region2: #{_se_resnet_forward_impl.1} parent=0 // loop_pre_header
    _
  $region3: #{_se_resnet_forward_impl.1} parent=0 // loop_header
    %s10 = sphi 0, %s14
    %p11 = scmp.ge.s32.totalorder %s10, 4
    %s20 = sphi 0, %s22
    %s23 = sphi 0, %s20
    %s24 = sphi 0, %s23
    %s40 = sphi 0, %s24
    %s44 = sphi 0, %s44
    %s46 = sphi 0, %s44
    %s47 = sphi 0, %s46
    %s61 = sphi 0, %s47
    %s65 = sphi 0, %s65
    %s67 = sphi 0, %s65
    %s68 = sphi 0, %s67
    %s82 = sphi 0, %s68
    %s86 = sphi 0, %s86
    %s88 = sphi 0, %s86
    %s89 = sphi 0, %s88
    %s103 = sphi 0, %s89
    %s109 = sphi 0, %s111
    %s112 = sphi 0, %s109
    %s113 = sphi 0, %s112
    %s129 = sphi 0, %s113
  $region4: #{_se_resnet_forward_impl.1} parent=0 // loop_header_branch
    %13 = sbr.rel (%p11) target = $region8
  $region5: #{_se_resnet_forward_impl.1} parent=0 // loop_body
    %s15 = ssub.s32 %s10, 1
    %s16 = ssub.s32 %s10, 2
    %s17 = sadd.s32 %s10, 1
    %s18 = ssub.s32 %s10, %s17
    %p19 = scmp.eq.s32.totalorder %s18, 0
    %s21 = sadd.s32 %s20, 1
    %s22 = scalar_select %p19, %s20, %s21
    %p25 = pneg %p19
    %p26 = scmp.eq.s32.totalorder %s10, 1
    %p27 = por %p25, %p26
    %p28 = scmp.ne.s32.totalorder %s20, %s23
    %p29 = scmp.eq.s32.totalorder %s10, 0
    %p30 = por %p28, %p29
    %p31 = scmp.ne.s32.totalorder %s20, %s23
    %p32 = scmp.eq.s32.totalorder %s15, 1
    %p33 = por %p31, %p32
    %p34 = scmp.ne.s32.totalorder %s23, %s24
    %p35 = scmp.eq.s32.totalorder %s15, 0
    %p36 = por %p34, %p35
    %p37 = scmp.ne.s32.totalorder %s23, %s24
    %p38 = scmp.eq.s32.totalorder %s16, 1
    %p39 = por %p37, %p38
    %p41 = scmp.ne.s32.totalorder %s24, %s40
    %p42 = scmp.eq.s32.totalorder %s16, 0
    %p43 = por %p41, %p42
    %s45 = sadd.s32 %s44, 1
    %p48 = scmp.eq.s32.totalorder %s10, 1
    %p49 = scmp.ne.s32.totalorder %s44, %s46
    %p50 = scmp.eq.s32.totalorder %s10, 0
    %p51 = por %p49, %p50
    %p52 = scmp.ne.s32.totalorder %s44, %s46
    %p53 = scmp.eq.s32.totalorder %s15, 1
    %p54 = por %p52, %p53
    %p55 = scmp.ne.s32.totalorder %s46, %s47
    %p56 = scmp.eq.s32.totalorder %s15, 0
    %p57 = por %p55, %p56
    %p58 = scmp.ne.s32.totalorder %s46, %s47
    %p59 = scmp.eq.s32.totalorder %s16, 1
    %p60 = por %p58, %p59
    %p62 = scmp.ne.s32.totalorder %s47, %s61
    %p63 = scmp.eq.s32.totalorder %s16, 0
    %p64 = por %p62, %p63
    %s66 = sadd.s32 %s65, 1
    %p69 = scmp.eq.s32.totalorder %s10, 1
    %p70 = scmp.ne.s32.totalorder %s65, %s67
    %p71 = scmp.eq.s32.totalorder %s10, 0
    %p72 = por %p70, %p71
    %p73 = scmp.ne.s32.totalorder %s65, %s67
    %p74 = scmp.eq.s32.totalorder %s15, 1
    %p75 = por %p73, %p74
    %p76 = scmp.ne.s32.totalorder %s67, %s68
    %p77 = scmp.eq.s32.totalorder %s15, 0
    %p78 = por %p76, %p77
    %p79 = scmp.ne.s32.totalorder %s67, %s68
    %p80 = scmp.eq.s32.totalorder %s16, 1
    %p81 = por %p79, %p80
    %p83 = scmp.ne.s32.totalorder %s68, %s82
    %p84 = scmp.eq.s32.totalorder %s16, 0
    %p85 = por %p83, %p84
    %s87 = sadd.s32 %s86, 1
    %p90 = scmp.eq.s32.totalorder %s10, 1
    %p91 = scmp.ne.s32.totalorder %s86, %s88
    %p92 = scmp.eq.s32.totalorder %s10, 0
    %p93 = por %p91, %p92
    %p94 = scmp.ne.s32.totalorder %s86, %s88
    %p95 = scmp.eq.s32.totalorder %s15, 1
    %p96 = por %p94, %p95
    %p97 = scmp.ne.s32.totalorder %s88, %s89
    %p98 = scmp.eq.s32.totalorder %s15, 0
    %p99 = por %p97, %p98
    %p100 = scmp.ne.s32.totalorder %s88, %s89
    %p101 = scmp.eq.s32.totalorder %s16, 1
    %p102 = por %p100, %p101
    %p104 = scmp.ne.s32.totalorder %s89, %s103
    %p105 = scmp.eq.s32.totalorder %s16, 0
    %p106 = por %p104, %p105
    %s107 = ssub.s32 %s10, %s17
    %p108 = scmp.eq.s32.totalorder %s107, 0
    %s110 = sadd.s32 %s109, 1
    %s111 = scalar_select %p108, %s109, %s110
    %p114 = pneg %p108
    %p115 = scmp.eq.s32.totalorder %s10, 1
    %p116 = por %p114, %p115
    %p117 = scmp.ne.s32.totalorder %s109, %s112
    %p118 = scmp.eq.s32.totalorder %s10, 0
    %p119 = por %p117, %p118
    %p120 = scmp.ne.s32.totalorder %s109, %s112
    %p121 = scmp.eq.s32.totalorder %s15, 1
    %p122 = por %p120, %p121
    %p123 = scmp.ne.s32.totalorder %s112, %s113
    %p124 = scmp.eq.s32.totalorder %s15, 0
    %p125 = por %p123, %p124
    %p126 = scmp.ne.s32.totalorder %s112, %s113
    %p127 = scmp.eq.s32.totalorder %s16, 1
    %p128 = por %p126, %p127
    %p130 = scmp.ne.s32.totalorder %s113, %s129
    %p131 = scmp.eq.s32.totalorder %s16, 0
    %p132 = por %p130, %p131
    %p133 = scmp.le.s32.totalorder 1, %s10
    %p134 = scmp.lt.s32.totalorder %s10, 3
    %p135 = pnand %p133, %p134
    %p136 = pneg %p135
    // Predicated region
    $region9: #{_se_resnet_forward_impl.1} parent=5 // pred_check
      _
    $region10: #{_se_resnet_forward_impl.1} parent=5 // pred_check_branch
      %138 = sbr.rel (%p135) target = $region12
    $region11: #{_se_resnet_forward_impl.1} parent=5 // pred_region
      %s139 = ssub.s32 %s10, 1
      // Predicated region
      $region13: #{_se_resnet_forward_impl.1} parent=11 // pred_check
        %p140 = pneg %p57
      $region14: #{_se_resnet_forward_impl.1} parent=11 // pred_check_branch
        %142 = sbr.rel (%p140) target = $region16
      $region15: #{_se_resnet_forward_impl.1} parent=11 // pred_region
        _
      $region16: #{_se_resnet_forward_impl.1} parent=11 // pred_fallthru
        _
      // Predicated region
      $region17: #{_se_resnet_forward_impl.1} parent=11 // pred_check
        %p143 = pneg %p78
      $region18: #{_se_resnet_forward_impl.1} parent=11 // pred_check_branch
        %145 = sbr.rel (%p143) target = $region20
      $region19: #{_se_resnet_forward_impl.1} parent=11 // pred_region
        _
      $region20: #{_se_resnet_forward_impl.1} parent=11 // pred_fallthru
        _
      // Predicated region
      $region21: #{_se_resnet_forward_impl.1} parent=11 // pred_check
        %p146 = pneg %p99
      $region22: #{_se_resnet_forward_impl.1} parent=11 // pred_check_branch
        %148 = sbr.rel (%p146) target = $region24
      $region23: #{_se_resnet_forward_impl.1} parent=11 // pred_region
        _
      $region24: #{_se_resnet_forward_impl.1} parent=11 // pred_fallthru
        _
    $region12: #{_se_resnet_forward_impl.1} parent=5 // pred_fallthru
      _
    %p149 = scmp.lt.s32.totalorder %s10, 2
    // Predicated region
    $region25: #{_se_resnet_forward_impl.1} parent=5 // pred_check
      %p150 = pneg %p149
    $region26: #{_se_resnet_forward_impl.1} parent=5 // pred_check_branch
      %152 = sbr.rel (%p150) target = $region28
    $region27: #{_se_resnet_forward_impl.1} parent=5 // pred_region
      // Predicated region
      $region29: #{_se_resnet_forward_impl.1} parent=27 // pred_check
        %p153 = pneg %p30
      $region30: #{_se_resnet_forward_impl.1} parent=27 // pred_check_branch
        %155 = sbr.rel (%p153) target = $region32
      $region31: #{_se_resnet_forward_impl.1} parent=27 // pred_region
        %p156 = scmp.lt.s32.totalorder %s10, 1
        %s157 = scalar_select %p156, %s10, 1
        %s158 = smul.addr %s157, 2
        %s159 = smul.addr %s158, 8
        %s160 = scalar_lea.vmem %s0, %s159
      $region32: #{_se_resnet_forward_impl.1} parent=27 // pred_fallthru
        _
    $region28: #{_se_resnet_forward_impl.1} parent=5 // pred_fallthru
      _
    %p161 = scmp.le.s32.totalorder 1, %s10
    %p162 = scmp.lt.s32.totalorder %s10, 3
    %p163 = pnand %p161, %p162
    %p164 = pneg %p163
    // Predicated region
    $region33: #{_se_resnet_forward_impl.1} parent=5 // pred_check
      _
    $region34: #{_se_resnet_forward_impl.1} parent=5 // pred_check_branch
      %166 = sbr.rel (%p163) target = $region36
    $region35: #{_se_resnet_forward_impl.1} parent=5 // pred_region
      %s167 = ssub.s32 %s10, 1
      %p168 = scmp.lt.s32.totalorder %s15, 1
      %s169 = scalar_select %p168, %s15, 1
      %s170 = smul.addr %s169, 2
      %s171 = smul.addr %s170, 8
      %s172 = scalar_lea.vmem %s0, %s171
      %p173 = pneg %p36
      %p174 = pneg %p33
      %p175 = pneg %p57
      %p176 = pneg %p54
      %p177 = pneg %p78
      %p178 = pneg %p75
      %p179 = pneg %p99
      %p180 = pneg %p96
      %p181 = pneg %p125
      %p182 = pneg %p122
      %p183 = scmp.lt.s32.totalorder %s15, 1
      %s184 = scalar_select %p183, %s15, 1
      %s185 = smul.addr %s184, 2
      %s186 = smul.addr %s185, 8
      %s187 = scalar_lea.vmem %s4, %s186
      %p188 = scmp.lt.s32.totalorder %s15, 1
      %s189 = scalar_select %p188, %s15, 1
      %s190 = smul.addr %s189, 2
      %s191 = smul.addr %s190, 8
      %s192 = scalar_lea.vmem %s0, %s191
      %p193 = scmp.lt.s32.totalorder %s15, 1
      %s194 = scalar_select %p193, %s15, 1
      %s195 = smul.addr %s194, 2
      %s196 = smul.addr %s195, 8
      %s197 = scalar_lea.vmem %s4, %s196
      %v198 = vld [vmem:[%s1] ss:$4 sm:$0x3]
      %s199 = scalar_lea.vmem %s1, 1
      %v200 = vld [vmem:[%s199] ss:$4 sm:$0x3]
      %v201 = vld [vmem:[%s1 + $0x2] sm:$0x1]
      %v202 = vld [vmem:[%s2] sm:$0xff]
      %v203 = vld [vmem:[%s3] sm:$0xff]
      %vm204 = vcmask 138240
      %205 = vst.msk [vmem:[#allocation2] sm:$0xff] %vm204, 0.0
      %vm206 = vcmask 277640
      %207 = vst.msk [vmem:[#allocation2 + $0x10] sm:$0xff] %vm206, 0.0
      %v208 = vld [vmem:[%s192] sm:$0xff]
      %v209 = vld [vmem:[%s192 + $0x8] sm:$0xff]
      %212 = vrot.lane.b32.xlu0 %v208, 17
      %v213 = vpop.permute.xlu0 %212
      %214 = vrot.lane.b32.xlu0 %v209, 17
      %v215 = vpop.permute.xlu0 %214
      %v216 = vsel %vm204, %v213, %v215
      %vm220 = vcmask 1047688
      %221 = vst.msk [vmem:[#allocation2] sm:$0xff] %vm220, %v213
      %222 = vst [vmem:[#allocation2 + $0x8] sm:$0xff] %v216
      %223 = vst.msk [vmem:[#allocation2 + $0x10] sm:$0xff] %vm204, %v215
      %v224 = vld [vmem:[#allocation2] sm:$0xff]
      %v225 = vld [vmem:[#allocation2 + $0x8] sm:$0xff]
      %v227 = vlaneseq
      %v228 = vshrl.u32 %v227, 7
      %v229 = vsub.s32 0, %v228
      %v230 = vrot.slane %v198, %v229
      %v231 = vlaneseq
      %v232 = vshrl.u32 %v231, 7
      %v233 = vsub.s32 1, %v232
      %v234 = vrot.slane %v198, %v233
      %v237 = vmul.f32 %v224, %v230
      %v238 = vmul.f32 %v225, %v234
      %239 = vst [vmem:[#allocation3] sm:$0xff] %v237
      %240 = vst [vmem:[#allocation3 + $0x8] sm:$0xff] %v238
      %v241 = vld [vmem:[#allocation2] sm:$0xff]
      %v242 = vld [vmem:[#allocation2 + $0x8] sm:$0xff]
      %v243 = vld [vmem:[#allocation2 + $0x10] sm:$0xff]
      %247 = vrot.lane.b32.xlu0 %v241, 127
      %v248 = vpop.permute.xlu0 %247
      %249 = vrot.lane.b32.xlu0 %v242, 127
      %v250 = vpop.permute.xlu0 %249
      %251 = vrot.lane.b32.xlu0 %v243, 127
      %v252 = vpop.permute.xlu0 %251
      %vm253 = vcmask 1039360
      %v254 = vsel %vm253, %v248, %v250
      %v255 = vsel %vm253, %v250, %v252
      %258 = vst [vmem:[#allocation3 + $0x10] sm:$0xff] %v254
      %259 = vst [vmem:[#allocation3 + $0x18] sm:$0xff] %v255
      %v260 = vld [vmem:[#allocation2] sm:$0xff]
      %v261 = vld [vmem:[#allocation2 + $0x8] sm:$0xff]
      %v262 = vld [vmem:[#allocation2 + $0x10] sm:$0xff]
      %v264 = vlaneseq
      %v265 = vshrl.u32 %v264, 7
      %v266 = vsub.s32 0, %v265
      %v267 = vrot.slane %v200, %v266
      %v268 = vlaneseq
      %v269 = vshrl.u32 %v268, 7
      %v270 = vsub.s32 1, %v269
      %v271 = vrot.slane %v200, %v270
      %272 = vrot.lane.b32.xlu0 %v267, 2
      %v273 = vpop.permute.xlu0 %272
      %274 = vrot.lane.b32.xlu0 %v271, 2
      %v275 = vpop.permute.xlu0 %274
      %vm276 = vcmask 15360
      %v277 = vsel %vm276, %v273, %v275
      %v281 = vmul.f32 %v260, %v273
      %v282 = vmul.f32 %v261, %v277
      %v283 = vmul.f32 %v262, %v275
      %287 = vrot.lane.b32.xlu0 %v281, 126
      %v288 = vpop.permute.xlu0 %287
      %289 = vrot.lane.b32.xlu0 %v282, 126
      %v290 = vpop.permute.xlu0 %289
      %291 = vrot.lane.b32.xlu0 %v283, 126
      %v292 = vpop.permute.xlu0 %291
      %vm293 = vcmask 1031168
      %v294 = vsel %vm293, %v288, %v290
      %v295 = vsel %vm293, %v290, %v292
      %298 = vst [vmem:[#allocation3 + $0x20] sm:$0xff] %v294
      %299 = vst [vmem:[#allocation3 + $0x28] sm:$0xff] %v295
      %v300 = vld [vmem:[#allocation2] sm:$0xff]
      %v301 = vld [vmem:[#allocation2 + $0x8] sm:$0xff]
      %v302 = vld [vmem:[#allocation2 + $0x10] sm:$0xff]
      %303 = vrot.lane.b32.xlu0 %v230, 16
      %v304 = vpop.permute.xlu0 %303
      %305 = vrot.lane.b32.xlu0 %v234, 16
      %v306 = vpop.permute.xlu0 %305
      %vm307 = vcmask 130048
      %v308 = vsel %vm307, %v304, %v306
      %v312 = vmul.f32 %v300, %v304
      %v313 = vmul.f32 %v301, %v308
      %v314 = vmul.f32 %v302, %v306
      %318 = vrot.lane.b32.xlu0 %v312, 112
      %v319 = vpop.permute.xlu0 %318
      %320 = vrot.lane.b32.xlu0 %v313, 112
      %v321 = vpop.permute.xlu0 %320
      %322 = vrot.lane.b32.xlu0 %v314, 112
      %v323 = vpop.permute.xlu0 %322
      %vm324 = vcmask 916480
      %v325 = vsel %vm324, %v319, %v321
      %v326 = vsel %vm324, %v321, %v323
      %329 = vst [vmem:[#allocation3 + $0x30] sm:$0xff] %v325
      %330 = vst [vmem:[#allocation3 + $0x38] sm:$0xff] %v326
      %v331 = vld [vmem:[#allocation2] sm:$0xff]
      %v332 = vld [vmem:[#allocation2 + $0x8] sm:$0xff]
      %v333 = vld [vmem:[#allocation2 + $0x10] sm:$0xff]
      %337 = vrot.lane.b32.xlu0 %v331, 111
      %v338 = vpop.permute.xlu0 %337
      %339 = vrot.lane.b32.xlu0 %v332, 111
      %v340 = vpop.permute.xlu0 %339
      %341 = vrot.lane.b32.xlu0 %v333, 111
      %v342 = vpop.permute.xlu0 %341
      %vm343 = vcmask 908288
      %v344 = vsel %vm343, %v338, %v340
      %v345 = vsel %vm343, %v340, %v342
      %348 = vst [vmem:[#allocation3 + $0x40] sm:$0xff] %v344
      %349 = vst [vmem:[#allocation3 + $0x48] sm:$0xff] %v345
      %v350 = vld [vmem:[#allocation2] sm:$0xff]
      %v351 = vld [vmem:[#allocation2 + $0x8] sm:$0xff]
      %v352 = vld [vmem:[#allocation2 + $0x10] sm:$0xff]
      %353 = vrot.lane.b32.xlu0 %v267, 18
      %v354 = vpop.permute.xlu0 %353
      %355 = vrot.lane.b32.xlu0 %v271, 18
      %v356 = vpop.permute.xlu0 %355
      %vm357 = vcmask 146432
      %v358 = vsel %vm357, %v354, %v356
      %v362 = vmul.f32 %v350, %v354
      %v363 = vmul.f32 %v351, %v358
      %v364 = vmul.f32 %v352, %v356
      %368 = vrot.lane.b32.xlu0 %v362, 110
      %v369 = vpop.permute.xlu0 %368
      %370 = vrot.lane.b32.xlu0 %v363, 110
      %v371 = vpop.permute.xlu0 %370
      %372 = vrot.lane.b32.xlu0 %v364, 110
      %v373 = vpop.permute.xlu0 %372
      %vm374 = vcmask 900096
      %v375 = vsel %vm374, %v369, %v371
      %v376 = vsel %vm374, %v371, %v373
      %379 = vst [vmem:[#allocation3 + $0x50] sm:$0xff] %v375
      %380 = vst [vmem:[#allocation3 + $0x58] sm:$0xff] %v376
      %v381 = vld [vmem:[#allocation2] sm:$0xff]
      %v382 = vld [vmem:[#allocation2 + $0x8] sm:$0xff]
      %v383 = vld [vmem:[#allocation2 + $0x10] sm:$0xff]
      %384 = vrot.lane.b32.xlu0 %v230, 32
      %v385 = vpop.permute.xlu0 %384
      %386 = vrot.lane.b32.xlu0 %v234, 32
      %v387 = vpop.permute.xlu0 %386
      %vm388 = vcmask 261120
      %v389 = vsel %vm388, %v385, %v387
      %v393 = vmul.f32 %v381, %v385
      %v394 = vmul.f32 %v382, %v389
      %v395 = vmul.f32 %v383, %v387
      %399 = vrot.lane.b32.xlu0 %v393, 96
      %v400 = vpop.permute.xlu0 %399
      %401 = vrot.lane.b32.xlu0 %v394, 96
      %v402 = vpop.permute.xlu0 %401
      %403 = vrot.lane.b32.xlu0 %v395, 96
      %v404 = vpop.permute.xlu0 %403
      %vm405 = vcmask 785408
      %v406 = vsel %vm405, %v400, %v402
      %v407 = vsel %vm405, %v402, %v404
      %410 = vst [vmem:[#allocation3 + $0x60] sm:$0xff] %v406
      %411 = vst [vmem:[#allocation3 + $0x68] sm:$0xff] %v407
      %v412 = vld [vmem:[#allocation2] sm:$0xff]
      %v413 = vld [vmem:[#allocation2 + $0x8] sm:$0xff]
      %v414 = vld [vmem:[#allocation2 + $0x10] sm:$0xff]
      %418 = vrot.lane.b32.xlu0 %v412, 95
      %v419 = vpop.permute.xlu0 %418
      %420 = vrot.lane.b32.xlu0 %v413, 95
      %v421 = vpop.permute.xlu0 %420
      %422 = vrot.lane.b32.xlu0 %v414, 95
      %v423 = vpop.permute.xlu0 %422
      %vm424 = vcmask 777216
      %v425 = vsel %vm424, %v419, %v421
      %v426 = vsel %vm424, %v421, %v423
      %429 = vst [vmem:[#allocation3 + $0x70] sm:$0xff] %v425
      %430 = vst [vmem:[#allocation3 + $0x78] sm:$0xff] %v426
      %v431 = vld [vmem:[#allocation2] sm:$0xff]
      %v432 = vld [vmem:[#allocation2 + $0x8] sm:$0xff]
      %v433 = vld [vmem:[#allocation2 + $0x10] sm:$0xff]
      %434 = vrot.lane.b32.xlu0 %v267, 34
      %v435 = vpop.permute.xlu0 %434
      %436 = vrot.lane.b32.xlu0 %v271, 34
      %v437 = vpop.permute.xlu0 %436
      %vm438 = vcmask 277504
      %v439 = vsel %vm438, %v435, %v437
      %v443 = vmul.f32 %v431, %v435
      %v444 = vmul.f32 %v432, %v439
      %v445 = vmul.f32 %v433, %v437
      %449 = vrot.lane.b32.xlu0 %v443, 94
      %v450 = vpop.permute.xlu0 %449
      %451 = vrot.lane.b32.xlu0 %v444, 94
      %v452 = vpop.permute.xlu0 %451
      %453 = vrot.lane.b32.xlu0 %v445, 94
      %v454 = vpop.permute.xlu0 %453
      %vm455 = vcmask 769024
      %v456 = vsel %vm455, %v450, %v452
      %v457 = vsel %vm455, %v452, %v454
      %460 = vst [vmem:[#allocation3 + $0x80] sm:$0xff] %v456
      %461 = vst [vmem:[#allocation3 + $0x88] sm:$0xff] %v457
      %v462 = vld [vmem:[#allocation3] sm:$0xff]
      %v463 = vld [vmem:[#allocation3 + $0x8] sm:$0xff]
      %v464 = vld [vmem:[#allocation3 + $0x10] sm:$0xff]
      %v465 = vld [vmem:[#allocation3 + $0x18] sm:$0xff]
      %v466 = vld [vmem:[#allocation3 + $0x20] sm:$0xff]
      %v467 = vld [vmem:[#allocation3 + $0x28] sm:$0xff]
      %v468 = vld [vmem:[#allocation3 + $0x30] sm:$0xff]
      %v469 = vld [vmem:[#allocation3 + $0x38] sm:$0xff]
      %v470 = vld [vmem:[#allocation3 + $0x40] sm:$0xff]
      %v471 = vld [vmem:[#allocation3 + $0x48] sm:$0xff]
      %v472 = vld [vmem:[#allocation3 + $0x50] sm:$0xff]
      %v473 = vld [vmem:[#allocation3 + $0x58] sm:$0xff]
      %v474 = vld [vmem:[#allocation3 + $0x60] sm:$0xff]
      %v475 = vld [vmem:[#allocation3 + $0x68] sm:$0xff]
      %v476 = vld [vmem:[#allocation3 + $0x70] sm:$0xff]
      %v477 = vld [vmem:[#allocation3 + $0x78] sm:$0xff]
      %v478 = vld [vmem:[#allocation3 + $0x80] sm:$0xff]
      %v479 = vld [vmem:[#allocation3 + $0x88] sm:$0xff]
      %481 = vset.pattern.permute.xlu0 0
      %482 = vperm.xlu0 %481, %v203
      %v483 = vpop.permute.xlu0 %482
      %vm485 = vcmask 588800
      %v487 = vsel %vm485, %v202, 0
      %489 = vmatprep.subr.mxu0 %v463
      %490 = vmatpush1.msra.mxu0 %v462
      %491 = vmatprep.subr.mxu0 %v465
      %492 = vmatpush1.msra.mxu0 %v464
      %493 = vmatprep.subr.mxu0 %v467
      %494 = vmatpush1.msra.mxu0 %v466
      %495 = vmatprep.subr.mxu0 %v469
      %496 = vmatpush1.msra.mxu0 %v468
      %497 = vmatprep.subr.mxu0 %v471
      %498 = vmatpush1.msra.mxu0 %v470
      %499 = vmatprep.subr.mxu0 %v473
      %500 = vmatpush1.msra.mxu0 %v472
      %501 = vmatprep.subr.mxu0 %v475
      %502 = vmatpush1.msra.mxu0 %v474
      %503 = vmatprep.subr.mxu0 %v477
      %504 = vmatpush1.msra.mxu0 %v476
      %505 = vmatprep.subr.mxu0 %v479
      %506 = vmatpush1.msra.mxu0 %v478
      %507 = vmatprep.subr.mxu0 0.0
      %508 = vmatpush1.msra.mxu0 0.0
      %509 = vmatprep.subr.mxu0 0.0
      %510 = vmatpush1.msra.mxu0 0.0
      %511 = vmatprep.subr.mxu0 0.0
      %512 = vmatpush1.msra.mxu0 0.0
      %513 = vmatprep.subr.mxu0 0.0
      %514 = vmatpush1.msra.mxu0 0.0
      %515 = vmatprep.subr.mxu0 0.0
      %516 = vmatpush1.msra.mxu0 0.0
      %517 = vmatprep.subr.mxu0 0.0
      %518 = vmatpush1.msra.mxu0 0.0
      %519 = vmatprep.subr.mxu0 0.0
      %520 = vmatpush1.msra.mxu0 0.0
      %521 = vmatprep.subr.mxu0 0.0
      %522 = vmatpush1.msra.mxu0 0.0
      %523 = vmatprep.subr.mxu0 0.0
      %524 = vmatpush1.msra.mxu0 0.0
      %525 = vmatprep.subr.mxu0 0.0
      %526 = vmatpush1.msra.mxu0 0.0
      %527 = vmatprep.subr.mxu0 0.0
      %528 = vmatpush1.msra.mxu0 0.0
      %529 = vmatprep.subr.mxu0 0.0
      %530 = vmatpush1.msra.mxu0 0.0
      %531 = vmatprep.subr.mxu0 0.0
      %532 = vmatpush1.msra.mxu0 0.0
      %533 = vmatprep.subr.mxu0 0.0
      %534 = vmatpush1.msra.mxu0 0.0
      %535 = vmatprep.subr.mxu0 0.0
      %536 = vmatpush1.msra.mxu0 0.0
      %537 = vmatprep.subr.mxu0 0.0
      %538 = vmatpush1.msra.mxu0 0.0
      %539 = vmatprep.subr.mxu0 0.0
      %540 = vmatpush1.msra.mxu0 0.0
      %541 = vmatprep.subr.mxu0 0.0
      %542 = vmatpush1.msra.mxu0 0.0
      %543 = vmatprep.subr.mxu0 0.0
      %544 = vmatpush1.msra.mxu0 0.0
      %545 = vmatprep.subr.mxu0 0.0
      %546 = vmatpush1.msra.mxu0 0.0
      %547 = vmatprep.subr.mxu0 0.0
      %548 = vmatpush1.msra.mxu0 0.0
      %549 = vmatprep.subr.mxu0 0.0
      %550 = vmatpush1.msra.mxu0 0.0
      %551 = vmatprep.subr.mxu0 0.0
      %552 = vmatpush1.msra.mxu0 0.0
      %553 = vmatprep.mubr.f32.mxu0 0.0
      %554 = vmatmul.mubr.f32.gmra.mrb[0].mxu0 %v487
      %v555 = vpop.f32.mrb[0].mxu0
      %v556 = vadd.f32 %v483, %v555
      %v557 = vpop.f32.mrb[0].mxu0
      %v558 = vadd.f32 %v483, %v557
      %559 = vdwg.mxu0
      %v560 = vmax.f32 %v556, 0.0
      %v561 = vmax.f32 %v558, 0.0
      %564 = vrot.lane.b32.xlu0 %v560, 17
      %v565 = vpop.permute.xlu0 %564
      %566 = vrot.lane.b32.xlu0 %v561, 17
      %v567 = vpop.permute.xlu0 %566
      %v568 = vsel %vm204, %v565, %v567
      %572 = vst.msk [vmem:[#allocation2] sm:$0xff] %vm220, %v565
      %573 = vst [vmem:[#allocation2 + $0x8] sm:$0xff] %v568
      %574 = vst.msk [vmem:[#allocation2 + $0x10] sm:$0xff] %vm204, %v567
      %v575 = vld [vmem:[#allocation2] sm:$0xff]
      %v576 = vld [vmem:[#allocation2 + $0x8] sm:$0xff]
      %v577 = vmul.f32 %v575, %v230
      %v578 = vmul.f32 %v576, %v234
      %579 = vst [vmem:[#allocation3] sm:$0xff] %v577
      %580 = vst [vmem:[#allocation3 + $0x8] sm:$0xff] %v578
      %v581 = vld [vmem:[#allocation2] sm:$0xff]
      %v582 = vld [vmem:[#allocation2 + $0x8] sm:$0xff]
      %v583 = vld [vmem:[#allocation2 + $0x10] sm:$0xff]
      %587 = vrot.lane.b32.xlu0 %v581, 127
      %v588 = vpop.permute.xlu0 %587
      %589 = vrot.lane.b32.xlu0 %v582, 127
      %v590 = vpop.permute.xlu0 %589
      %591 = vrot.lane.b32.xlu0 %v583, 127
      %v592 = vpop.permute.xlu0 %591
      %v593 = vsel %vm253, %v588, %v590
      %v594 = vsel %vm253, %v590, %v592
      %597 = vst [vmem:[#allocation3 + $0x10] sm:$0xff] %v593
      %598 = vst [vmem:[#allocation3 + $0x18] sm:$0xff] %v594
      %v599 = vld [vmem:[#allocation2] sm:$0xff]
      %v600 = vld [vmem:[#allocation2 + $0x8] sm:$0xff]
      %v601 = vld [vmem:[#allocation2 + $0x10] sm:$0xff]
      %v602 = vmul.f32 %v599, %v273
      %v603 = vmul.f32 %v600, %v277
      %v604 = vmul.f32 %v601, %v275
      %608 = vrot.lane.b32.xlu0 %v602, 126
      %v609 = vpop.permute.xlu0 %608
      %610 = vrot.lane.b32.xlu0 %v603, 126
      %v611 = vpop.permute.xlu0 %610
      %612 = vrot.lane.b32.xlu0 %v604, 126
      %v613 = vpop.permute.xlu0 %612
      %v614 = vsel %vm293, %v609, %v611
      %v615 = vsel %vm293, %v611, %v613
      %618 = vst [vmem:[#allocation3 + $0x20] sm:$0xff] %v614
      %619 = vst [vmem:[#allocation3 + $0x28] sm:$0xff] %v615
      %v620 = vld [vmem:[#allocation2] sm:$0xff]
      %v621 = vld [vmem:[#allocation2 + $0x8] sm:$0xff]
      %v622 = vld [vmem:[#allocation2 + $0x10] sm:$0xff]
      %v623 = vmul.f32 %v620, %v304
      %v624 = vmul.f32 %v621, %v308
      %v625 = vmul.f32 %v622, %v306
      %629 = vrot.lane.b32.xlu0 %v623, 112
      %v630 = vpop.permute.xlu0 %629
      %631 = vrot.lane.b32.xlu0 %v624, 112
      %v632 = vpop.permute.xlu0 %631
      %633 = vrot.lane.b32.xlu0 %v625, 112
      %v634 = vpop.permute.xlu0 %633
      %v635 = vsel %vm324, %v630, %v632
      %v636 = vsel %vm324, %v632, %v634
      %639 = vst [vmem:[#allocation3 + $0x30] sm:$0xff] %v635
      %640 = vst [vmem:[#allocation3 + $0x38] sm:$0xff] %v636
      %v641 = vld [vmem:[#allocation2] sm:$0xff]
      %v642 = vld [vmem:[#allocation2 + $0x8] sm:$0xff]
      %v643 = vld [vmem:[#allocation2 + $0x10] sm:$0xff]
      %647 = vrot.lane.b32.xlu0 %v641, 111
      %v648 = vpop.permute.xlu0 %647
      %649 = vrot.lane.b32.xlu0 %v642, 111
      %v650 = vpop.permute.xlu0 %649
      %651 = vrot.lane.b32.xlu0 %v643, 111
      %v652 = vpop.permute.xlu0 %651
      %v653 = vsel %vm343, %v648, %v650
      %v654 = vsel %vm343, %v650, %v652
      %657 = vst [vmem:[#allocation3 + $0x40] sm:$0xff] %v653
      %658 = vst [vmem:[#allocation3 + $0x48] sm:$0xff] %v654
      %v659 = vld [vmem:[#allocation2] sm:$0xff]
      %v660 = vld [vmem:[#allocation2 + $0x8] sm:$0xff]
      %v661 = vld [vmem:[#allocation2 + $0x10] sm:$0xff]
      %v662 = vmul.f32 %v659, %v354
      %v663 = vmul.f32 %v660, %v358
      %v664 = vmul.f32 %v661, %v356
      %668 = vrot.lane.b32.xlu0 %v662, 110
      %v669 = vpop.permute.xlu0 %668
      %670 = vrot.lane.b32.xlu0 %v663, 110
      %v671 = vpop.permute.xlu0 %670
      %672 = vrot.lane.b32.xlu0 %v664, 110
      %v673 = vpop.permute.xlu0 %672
      %v674 = vsel %vm374, %v669, %v671
      %v675 = vsel %vm374, %v671, %v673
      %678 = vst [vmem:[#allocation3 + $0x50] sm:$0xff] %v674
      %679 = vst [vmem:[#allocation3 + $0x58] sm:$0xff] %v675
      %v680 = vld [vmem:[#allocation2] sm:$0xff]
      %v681 = vld [vmem:[#allocation2 + $0x8] sm:$0xff]
      %v682 = vld [vmem:[#allocation2 + $0x10] sm:$0xff]
      %v683 = vmul.f32 %v680, %v385
      %v684 = vmul.f32 %v681, %v389
      %v685 = vmul.f32 %v682, %v387
      %689 = vrot.lane.b32.xlu0 %v683, 96
      %v690 = vpop.permute.xlu0 %689
      %691 = vrot.lane.b32.xlu0 %v684, 96
      %v692 = vpop.permute.xlu0 %691
      %693 = vrot.lane.b32.xlu0 %v685, 96
      %v694 = vpop.permute.xlu0 %693
      %v695 = vsel %vm405, %v690, %v692
      %v696 = vsel %vm405, %v692, %v694
      %699 = vst [vmem:[#allocation3 + $0x60] sm:$0xff] %v695
      %700 = vst [vmem:[#allocation3 + $0x68] sm:$0xff] %v696
      %v701 = vld [vmem:[#allocation2] sm:$0xff]
      %v702 = vld [vmem:[#allocation2 + $0x8] sm:$0xff]
      %v703 = vld [vmem:[#allocation2 + $0x10] sm:$0xff]
      %707 = vrot.lane.b32.xlu0 %v701, 95
      %v708 = vpop.permute.xlu0 %707
      %709 = vrot.lane.b32.xlu0 %v702, 95
      %v710 = vpop.permute.xlu0 %709
      %711 = vrot.lane.b32.xlu0 %v703, 95
      %v712 = vpop.permute.xlu0 %711
      %v713 = vsel %vm424, %v708, %v710
      %v714 = vsel %vm424, %v710, %v712
      %717 = vst [vmem:[#allocation3 + $0x70] sm:$0xff] %v713
      %718 = vst [vmem:[#allocation3 + $0x78] sm:$0xff] %v714
      %v719 = vld [vmem:[#allocation2] sm:$0xff]
      %v720 = vld [vmem:[#allocation2 + $0x8] sm:$0xff]
      %v721 = vld [vmem:[#allocation2 + $0x10] sm:$0xff]
      %v722 = vmul.f32 %v719, %v435
      %v723 = vmul.f32 %v720, %v439
      %v724 = vmul.f32 %v721, %v437
      %728 = vrot.lane.b32.xlu0 %v722, 94
      %v729 = vpop.permute.xlu0 %728
      %730 = vrot.lane.b32.xlu0 %v723, 94
      %v731 = vpop.permute.xlu0 %730
      %732 = vrot.lane.b32.xlu0 %v724, 94
      %v733 = vpop.permute.xlu0 %732
      %v734 = vsel %vm455, %v729, %v731
      %v735 = vsel %vm455, %v731, %v733
      %738 = vst [vmem:[#allocation3 + $0x80] sm:$0xff] %v734
      %739 = vst [vmem:[#allocation3 + $0x88] sm:$0xff] %v735
      %v740 = vld [vmem:[#allocation3] sm:$0xff]
      %v741 = vld [vmem:[#allocation3 + $0x8] sm:$0xff]
      %v742 = vld [vmem:[#allocation3 + $0x10] sm:$0xff]
      %v743 = vld [vmem:[#allocation3 + $0x18] sm:$0xff]
      %v744 = vld [vmem:[#allocation3 + $0x20] sm:$0xff]
      %v745 = vld [vmem:[#allocation3 + $0x28] sm:$0xff]
      %v746 = vld [vmem:[#allocation3 + $0x30] sm:$0xff]
      %v747 = vld [vmem:[#allocation3 + $0x38] sm:$0xff]
      %v748 = vld [vmem:[#allocation3 + $0x40] sm:$0xff]
      %v749 = vld [vmem:[#allocation3 + $0x48] sm:$0xff]
      %v750 = vld [vmem:[#allocation3 + $0x50] sm:$0xff]
      %v751 = vld [vmem:[#allocation3 + $0x58] sm:$0xff]
      %v752 = vld [vmem:[#allocation3 + $0x60] sm:$0xff]
      %v753 = vld [vmem:[#allocation3 + $0x68] sm:$0xff]
      %v754 = vld [vmem:[#allocation3 + $0x70] sm:$0xff]
      %v755 = vld [vmem:[#allocation3 + $0x78] sm:$0xff]
      %v756 = vld [vmem:[#allocation3 + $0x80] sm:$0xff]
      %v757 = vld [vmem:[#allocation3 + $0x88] sm:$0xff]
      %758 = vmatprep.subr.mxu0 %v741
      %759 = vmatpush1.msra.mxu0 %v740
      %760 = vmatprep.subr.mxu0 %v743
      %761 = vmatpush1.msra.mxu0 %v742
      %762 = vmatprep.subr.mxu0 %v745
      %763 = vmatpush1.msra.mxu0 %v744
      %764 = vmatprep.subr.mxu0 %v747
      %765 = vmatpush1.msra.mxu0 %v746
      %766 = vmatprep.subr.mxu0 %v749
      %767 = vmatpush1.msra.mxu0 %v748
      %768 = vmatprep.subr.mxu0 %v751
      %769 = vmatpush1.msra.mxu0 %v750
      %770 = vmatprep.subr.mxu0 %v753
      %771 = vmatpush1.msra.mxu0 %v752
      %772 = vmatprep.subr.mxu0 %v755
      %773 = vmatpush1.msra.mxu0 %v754
      %774 = vmatprep.subr.mxu0 %v757
      %775 = vmatpush1.msra.mxu0 %v756
      %776 = vmatprep.subr.mxu0 0.0
      %777 = vmatpush1.msra.mxu0 0.0
      %778 = vmatprep.subr.mxu0 0.0
      %779 = vmatpush1.msra.mxu0 0.0
      %780 = vmatprep.subr.mxu0 0.0
      %781 = vmatpush1.msra.mxu0 0.0
      %782 = vmatprep.subr.mxu0 0.0
      %783 = vmatpush1.msra.mxu0 0.0
      %784 = vmatprep.subr.mxu0 0.0
      %785 = vmatpush1.msra.mxu0 0.0
      %786 = vmatprep.subr.mxu0 0.0
      %787 = vmatpush1.msra.mxu0 0.0
      %788 = vmatprep.subr.mxu0 0.0
      %789 = vmatpush1.msra.mxu0 0.0
      %790 = vmatprep.subr.mxu0 0.0
      %791 = vmatpush1.msra.mxu0 0.0
      %792 = vmatprep.subr.mxu0 0.0
      %793 = vmatpush1.msra.mxu0 0.0
      %794 = vmatprep.subr.mxu0 0.0
      %795 = vmatpush1.msra.mxu0 0.0
      %796 = vmatprep.subr.mxu0 0.0
      %797 = vmatpush1.msra.mxu0 0.0
      %798 = vmatprep.subr.mxu0 0.0
      %799 = vmatpush1.msra.mxu0 0.0
      %800 = vmatprep.subr.mxu0 0.0
      %801 = vmatpush1.msra.mxu0 0.0
      %802 = vmatprep.subr.mxu0 0.0
      %803 = vmatpush1.msra.mxu0 0.0
      %804 = vmatprep.subr.mxu0 0.0
      %805 = vmatpush1.msra.mxu0 0.0
      %806 = vmatprep.subr.mxu0 0.0
      %807 = vmatpush1.msra.mxu0 0.0
      %808 = vmatprep.subr.mxu0 0.0
      %809 = vmatpush1.msra.mxu0 0.0
      %810 = vmatprep.subr.mxu0 0.0
      %811 = vmatpush1.msra.mxu0 0.0
      %812 = vmatprep.subr.mxu0 0.0
      %813 = vmatpush1.msra.mxu0 0.0
      %814 = vmatprep.subr.mxu0 0.0
      %815 = vmatpush1.msra.mxu0 0.0
      %816 = vmatprep.subr.mxu0 0.0
      %817 = vmatpush1.msra.mxu0 0.0
      %818 = vmatprep.subr.mxu0 0.0
      %819 = vmatpush1.msra.mxu0 0.0
      %820 = vmatprep.subr.mxu0 0.0
      %821 = vmatpush1.msra.mxu0 0.0
      %822 = vmatprep.mubr.f32.mxu0 0.0
      %823 = vmatmul.mubr.f32.gmra.mrb[0].mxu0 %v487
      %v824 = vpop.f32.mrb[0].mxu0
      %v825 = vadd.f32 %v483, %v824
      %v826 = vpop.f32.mrb[0].mxu0
      %v827 = vadd.f32 %v483, %v826
      %828 = vdwg.mxu0
      %v829 = vadd.f32 %v825, %v827
      %830 = vadd.xlane.f32.xlu0 %v829
      %v831 = vpop.xlane.xlu0 %830
      %v832 = vmul.f32 %v831, 0.00390625
      %v833 = vmul.f32 %v203, %v832
      %vm834 = vcmask 31760
      %v835 = vsel %vm834, %v833, 0.0
      %v836 = vrot.slane %v835, 4
      %v837 = vadd.f32 %v835, %v836
      %v838 = vrot.slane %v837, 2
      %v839 = vadd.f32 %v837, %v838
      %v840 = vrot.slane %v839, 1
      %v841 = vadd.f32 %v839, %v840
      %v843 = vlaneseq
      %v844 = vshrl.u32 %v843, 7
      %v845 = vsub.s32 0, %v844
      %v846 = vrot.slane %v201, %v845
      %847 = vrot.lane.b32.xlu0 %v846, 2
      %v848 = vpop.permute.xlu0 %847
      %v850 = vadd.f32 %v841, %v848
      %v851 = vmax.f32 %v850, 0.0
      %v852 = vlaneseq
      %v853 = vshrl.u32 %v852, 7
      %v854 = vsub.s32 0, %v853
      %v855 = vrot.slane %v851, %v854
      %857 = vrot.lane.b32.xlu0 %v855, 2
      %v858 = vpop.permute.xlu0 %857
      %v860 = vmul.f32 %v203, %v858
      %862 = vrot.lane.b32.xlu0 %v860, 124
      %v863 = vpop.permute.xlu0 %862
      %v865 = vsel %vm276, %v863, 0.0
      %866 = vadd.xlane.f32.xlu0 %v865
      %v867 = vpop.xlane.xlu0 %866
      %v868 = vadd.f32 %v867, %v203
      %v869 = vsub.f32 0.0, %v868
      %v870 = vmul.f32 %v869, 1.442695
      %v871 = vpow.pop %v870
      %v872 = vadd.f32 %v871, 1.0
      %v873 = vrcp.pop %v872
      %v874 = vmul.f32 1.0, %v873
      %876 = vset.pattern.permute.xlu0 1
      %877 = vperm.xlu0 %876, %v874
      %v878 = vpop.permute.xlu0 %877
      %v880 = vmul.f32 %v825, %v878
      %v881 = vmul.f32 %v827, %v878
      %v882 = vld [vmem:[%s192] sm:$0xff]
      %v883 = vld [vmem:[%s192 + $0x8] sm:$0xff]
      %v884 = vadd.f32 %v880, %v882
      %v885 = vadd.f32 %v881, %v883
      %v886 = vmax.f32 %v884, 0.0
      %v887 = vmax.f32 %v885, 0.0
      %888 = vst [vmem:[%s197] sm:$0xff] %v886
      %889 = vst [vmem:[%s197 + $0x8] sm:$0xff] %v887
      %p890 = scmp.lt.s32.totalorder %s15, 1
      %s891 = scalar_select %p890, %s15, 1
      %s892 = smul.addr %s891, 2
      %s893 = smul.addr %s892, 8
      %s894 = scalar_lea.vmem %s4, %s893
      // Predicated region
      $region37: #{_se_resnet_forward_impl.1} parent=35 // pred_check
        %p895 = pneg %p122
      $region38: #{_se_resnet_forward_impl.1} parent=35 // pred_check_branch
        %897 = sbr.rel (%p895) target = $region40
      $region39: #{_se_resnet_forward_impl.1} parent=35 // pred_region
        _
      $region40: #{_se_resnet_forward_impl.1} parent=35 // pred_fallthru
        _
    $region36: #{_se_resnet_forward_impl.1} parent=5 // pred_fallthru
      _
    %p898 = scmp.le.s32.totalorder 2, %s10
    // Predicated region
    $region41: #{_se_resnet_forward_impl.1} parent=5 // pred_check
      %p899 = pneg %p898
    $region42: #{_se_resnet_forward_impl.1} parent=5 // pred_check_branch
      %901 = sbr.rel (%p899) target = $region44
    $region43: #{_se_resnet_forward_impl.1} parent=5 // pred_region
      %s902 = ssub.s32 %s10, 2
      // Predicated region
      $region45: #{_se_resnet_forward_impl.1} parent=43 // pred_check
        %p903 = pneg %p128
      $region46: #{_se_resnet_forward_impl.1} parent=43 // pred_check_branch
        %905 = sbr.rel (%p903) target = $region48
      $region47: #{_se_resnet_forward_impl.1} parent=43 // pred_region
        %p906 = scmp.lt.s32.totalorder %s16, 1
        %s907 = scalar_select %p906, %s16, 1
        %s908 = smul.addr %s907, 2
        %s909 = smul.addr %s908, 8
        %s910 = scalar_lea.vmem %s4, %s909
      $region48: #{_se_resnet_forward_impl.1} parent=43 // pred_fallthru
        _
    $region44: #{_se_resnet_forward_impl.1} parent=5 // pred_fallthru
      _
  $region6: #{_se_resnet_forward_impl.1} parent=0 // loop_footer
    %s14 = sadd.s32 1, %s10
  $region7: #{_se_resnet_forward_impl.1} parent=0 // loop_footer_branch
    %9 = sbr.rel target = $region3
  $region8: #{_se_resnet_forward_impl.1} parent=0 // loop_exit
    _

</llo_original>
